<compile_context>
chip_gen: v7x
topology: tpu7x:2x2x1
jax: 0.10.0
libtpu: 0.0.40
codegen_flags: <defaults>
</compile_context>

<pallas_src>
import numpy as np
import jax
import jax.numpy as jnp
from jax.experimental import pallas as pl
from jax.experimental.pallas import tpu as pltpu

IN_DIM = 2                              # xy
N_FREQS = 10                            # Embedding(in_channels=2, N_freqs=10)
EMB_DIM = IN_DIM * (2 * N_FREQS + 1)    # 42
HID = 60
OUT_DIM = 2
EPS = 1e-5                              # BatchNorm1d default


# ---------------------------------------------------------------------------
# Kernel A (grid over B, parallel): fc_1_1 + ReLU, plus per-batch BN partial sums.
# ---------------------------------------------------------------------------
def _fc1_kernel(emb_ref, w1_ref, b1_ref, h_ref, stats_ref):
    emb = emb_ref[0]                                              # [N, 42]
    h = (jnp.dot(emb, w1_ref[...], preferred_element_type=jnp.float32)
         + b1_ref[...])                                           # [N, 60]
    h = jnp.maximum(h, 0.0)                                       # ReLU
    h_ref[0] = h
    # Per-batch partial statistics for BatchNorm (reduced over B in the wrapper).
    stats_ref[0, 0:1, :] = jnp.sum(h, axis=0, keepdims=True)      # sum_n h
    stats_ref[0, 1:2, :] = jnp.sum(h * h, axis=0, keepdims=True)  # sum_n h^2


# ---------------------------------------------------------------------------
# Kernel B (grid over B, parallel): BN apply + residual self-attention + ReLU
#                                   + global max + fc_3 (concat folded).
# ---------------------------------------------------------------------------
def _attn_head_kernel(h_ref, scale_ref, shift_ref, wqkv_ref, bqkv_ref,
                      w3a_ref, w3b_ref, b3_ref, out_ref):
    # BatchNorm apply with precomputed scale/shift (gamma/beta folded in).
    h = h_ref[0] * scale_ref[...] + shift_ref[...]                # [N, 60]

    # Fused QKV projection: one [N,60]@[60,180] MXU dot, then static lane slices.
    qkv = (jnp.dot(h, wqkv_ref[...], preferred_element_type=jnp.float32)
           + bqkv_ref[...])                                       # [N, 180]
    q = qkv[:, 0:HID]
    k = qkv[:, HID:2 * HID]
    v = qkv[:, 2 * HID:3 * HID]        # attention gamma pre-folded into v columns

    # Attention: bf16 MXU inputs, f32 accumulation. Contract the last dim of both
    # q and k directly (no materialized transpose).
    qb = q.astype(jnp.bfloat16)
    kb = k.astype(jnp.bfloat16)
    energy = jax.lax.dot_general(qb, kb, (((1,), (1,)), ((), ())),
                                 preferred_element_type=jnp.float32)   # [N, N]
    energy = energy - jnp.max(energy, axis=-1, keepdims=True)
    p = jnp.exp(energy)
    rowsum = jnp.sum(p, axis=-1, keepdims=True)                   # [N, 1]
    att = jnp.dot(p.astype(jnp.bfloat16), v.astype(jnp.bfloat16),
                  preferred_element_type=jnp.float32)             # [N, 60]
    att = att * pl.reciprocal(rowsum, approx=True)                # fold 1/rowsum

    h = jnp.maximum(att + h, 0.0)                                 # residual + ReLU

    # Global max over points + fc_3 with the [local || global] concat folded into
    # split weights (w3a for per-point rows, w3b for the global feature).
    xg = jnp.max(h, axis=0, keepdims=True)                        # [1, 60]
    out = (jnp.dot(h, w3a_ref[...], preferred_element_type=jnp.float32)
           + jnp.dot(xg, w3b_ref[...], preferred_element_type=jnp.float32)
           + b3_ref[...])                                         # [N, out_dim]
    out_ref[0] = out


# ---------------------------------------------------------------------------
# Wrapper
# ---------------------------------------------------------------------------
def discriminator_forward(x_pose, params):
    """x_pose: [B, N, 2] float32 -> [B, N, out_dim]."""
    (w1, b1, bn_g, bn_b, wq, bq, wk, bk, wv, bv, attn_gamma, w3, b3) = params
    x_pose = x_pose.astype(jnp.float32)
    B, N, _ = x_pose.shape
    out_dim = w3.shape[1]

    # NeRF positional embedding [x, sin(f0 x), cos(f0 x), ...] as ONE [B,N,42]
    # operand, matching the row order of the original W1.
    feats = [x_pose]
    for j in range(N_FREQS):
        f = 2.0 ** j
        feats.append(jnp.sin(f * x_pose))
        feats.append(jnp.cos(f * x_pose))
    emb = jnp.concatenate(feats, axis=-1)                          # [B, N, 42]

    # Host-side parameter folding.
    wqkv = jnp.concatenate([wq, wk, attn_gamma * wv], axis=1)      # [60, 180]
    bqkv = jnp.concatenate([bq, bk, attn_gamma * bv], axis=0).reshape(1, 3 * HID)
    w3a = w3[:HID, :]                                              # local rows
    w3b = w3[HID:, :]                                              # global rows

    par = pltpu.CompilerParams(dimension_semantics=("parallel",))

    # ---- Kernel A: fc_1_1 + ReLU + BN partial sums, per batch. ----
    h, stats = pl.pallas_call(
        _fc1_kernel,
        grid=(B,),
        in_specs=[
            pl.BlockSpec((1, N, EMB_DIM), lambda b: (b, 0, 0)),
            pl.BlockSpec((EMB_DIM, HID), lambda b: (0, 0)),
            pl.BlockSpec((1, HID), lambda b: (0, 0)),
        ],
        out_specs=[
            pl.BlockSpec((1, N, HID), lambda b: (b, 0, 0)),
            pl.BlockSpec((1, 2, HID), lambda b: (b, 0, 0)),
        ],
        out_shape=(
            jax.ShapeDtypeStruct((B, N, HID), jnp.float32),
            jax.ShapeDtypeStruct((B, 2, HID), jnp.float32),
        ),
        compiler_params=par,
    )(emb, w1, b1.reshape(1, HID))

    # ---- Cheap XLA reduction: BN batch statistics -> fused scale/shift. ----
    cnt = jnp.float32(B * N)
    tot = jnp.sum(stats, axis=0)                                   # [2, 60]
    mean = tot[0] / cnt
    var = tot[1] / cnt - mean * mean                               # biased var (PyTorch train mode)
    inv_std = jax.lax.rsqrt(var + EPS)
    scale = (bn_g * inv_std).reshape(1, HID)
    shift = (bn_b - mean * bn_g * inv_std).reshape(1, HID)

    # ---- Kernel B: BN apply + attention + ReLU + global max + fc_3, per batch. ----
    out = pl.pallas_call(
        _attn_head_kernel,
        grid=(B,),
        in_specs=[
            pl.BlockSpec((1, N, HID), lambda b: (b, 0, 0)),
            pl.BlockSpec((1, HID), lambda b: (0, 0)),
            pl.BlockSpec((1, HID), lambda b: (0, 0)),
            pl.BlockSpec((HID, 3 * HID), lambda b: (0, 0)),
            pl.BlockSpec((1, 3 * HID), lambda b: (0, 0)),
            pl.BlockSpec((HID, out_dim), lambda b: (0, 0)),
            pl.BlockSpec((HID, out_dim), lambda b: (0, 0)),
            pl.BlockSpec((1, out_dim), lambda b: (0, 0)),
        ],
        out_specs=pl.BlockSpec((1, N, out_dim), lambda b: (b, 0, 0)),
        out_shape=jax.ShapeDtypeStruct((B, N, out_dim), jnp.float32),
        compiler_params=par,
    )(h, scale, shift, wqkv, bqkv, w3a, w3b, b3.reshape(1, out_dim))

    return out


# ---------------------------------------------------------------------------
# Init + pure-JAX reference (high-precision) for the correctness check.
# ---------------------------------------------------------------------------
def init_params(key, out_dim=OUT_DIM):
    """PyTorch-like init. gamma is set nonzero (SAGAN init is 0) so the
    attention path is actually exercised by the check."""
    def linear(k, fan_in, fan_out):
        kw, kb = jax.random.split(k)
        bound = 1.0 / float(np.sqrt(fan_in))
        w = jax.random.uniform(kw, (fan_in, fan_out), jnp.float32, -bound, bound)
        b = jax.random.uniform(kb, (fan_out,), jnp.float32, -bound, bound)
        return w, b

    keys = jax.random.split(key, 5)
    w1, b1 = linear(keys[0], EMB_DIM, HID)
    bn_g = jnp.ones((HID,), jnp.float32)
    bn_b = jnp.zeros((HID,), jnp.float32)
    wq, bq = linear(keys[1], HID, HID)
    wk, bk = linear(keys[2], HID, HID)
    wv, bv = linear(keys[3], HID, HID)
    attn_gamma = jnp.float32(0.5)
    w3, b3 = linear(keys[4], 2 * HID, out_dim)
    return (w1, b1, bn_g, bn_b, wq, bq, wk, bk, wv, bv, attn_gamma, w3, b3)


def reference_forward(x_pose, params):
    """Pure-JAX reference mirroring the PyTorch forward (training-mode BN),
    computed at HIGHEST matmul precision."""
    (w1, b1, bn_g, bn_b, wq, bq, wk, bk, wv, bv, attn_gamma, w3, b3) = params
    hp = jax.lax.Precision.HIGHEST
    feats = [x_pose]
    for j in range(N_FREQS):
        f = 2.0 ** j
        feats.append(jnp.sin(f * x_pose))
        feats.append(jnp.cos(f * x_pose))
    x = jnp.concatenate(feats, axis=-1)                           # [B, N, 42]
    x = jnp.dot(x, w1, precision=hp) + b1
    x = jax.nn.relu(x)
    mean = jnp.mean(x, axis=(0, 1), keepdims=True)
    var = jnp.mean(jnp.square(x - mean), axis=(0, 1), keepdims=True)
    x = (x - mean) / jnp.sqrt(var + EPS) * bn_g + bn_b
    q = jnp.dot(x, wq, precision=hp) + bq
    k = jnp.dot(x, wk, precision=hp) + bk
    v = jnp.dot(x, wv, precision=hp) + bv
    energy = jnp.einsum('bnd,bmd->bnm', q, k, precision=hp)
    attn = jax.nn.softmax(energy, axis=-1)
    x = attn_gamma * jnp.einsum('bnm,bmd->bnd', attn, v, precision=hp) + x
    x = jax.nn.relu(x)
    x_global = jnp.max(x, axis=1)
    x = jnp.concatenate(
        [x, jnp.broadcast_to(x_global[:, None, :], x.shape)], axis=-1)
    return jnp.dot(x, w3, precision=hp) + b3


if __name__ == "__main__":
    key = jax.random.PRNGKey(0)
    key, kx = jax.random.split(key)
    B, N = 2, 8                                   # small, sublane-aligned N
    x_pose = jax.random.normal(kx, (B, N, IN_DIM), jnp.float32)

    params = init_params(key, OUT_DIM)
    out = jax.block_until_ready(jax.jit(discriminator_forward)(x_pose, params))

    assert out.shape == (B, N, OUT_DIM), out.shape
    ref = reference_forward(x_pose, params)
    max_err = float(jnp.max(jnp.abs(out - ref)))
    # Kernel runs the attention matmuls with bf16 MXU inputs (+ approx reciprocal),
    # so the tolerance is looser than the previous all-f32-HIGHEST version.
    assert jnp.allclose(out, ref, atol=5e-2, rtol=5e-2), f"mismatch: {max_err}"
    print("KERNEL_OK")
</pallas_src>

<mosaic_0001>
module attributes {stable_mosaic.version = 11 : i64} {
  func.func @_fc1_kernel(%arg0: i32, %arg1: memref<1x8x42xf32, #tpu.memory_space<vmem>>, %arg2: memref<42x60xf32, #tpu.memory_space<vmem>>, %arg3: memref<1x60xf32, #tpu.memory_space<vmem>>, %arg4: memref<1x8x60xf32, #tpu.memory_space<vmem>>, %arg5: memref<1x2x60xf32, #tpu.memory_space<vmem>>) attributes {dimension_semantics = [#tpu.dimension_semantics<parallel>], iteration_bounds = array<i64: 2>, scalar_prefetch = 0 : i64, scratch_operands = 0 : i64, tpu.core_type = #tpu.core_type<tc>, window_params = [{transform_indices = @transform_0, window_bounds = array<i64: 1, 8, 42>}, {pipeline_mode = #tpu.pipeline_mode<synchronous>, transform_indices = @transform_1, window_bounds = array<i64: 42, 60>}, {pipeline_mode = #tpu.pipeline_mode<synchronous>, transform_indices = @transform_2, window_bounds = array<i64: 1, 60>}, {transform_indices = @transform_3, window_bounds = array<i64: 1, 8, 60>}, {transform_indices = @transform_4, window_bounds = array<i64: 1, 2, 60>}]} {
    %c0 = arith.constant 0 : index
    %c0_0 = arith.constant 0 : index
    %c0_1 = arith.constant 0 : index
    %0 = vector.load %arg1[%c0, %c0_0, %c0_1] : memref<1x8x42xf32, #tpu.memory_space<vmem>>, vector<1x8x42xf32>
    %1 = vector.shape_cast %0 : vector<1x8x42xf32> to vector<8x42xf32>
    %c0_2 = arith.constant 0 : index
    %c0_3 = arith.constant 0 : index
    %2 = vector.load %arg2[%c0_2, %c0_3] : memref<42x60xf32, #tpu.memory_space<vmem>>, vector<42x60xf32>
    %cst = arith.constant dense<0.000000e+00> : vector<8x60xf32>
    %3 = tpu.matmul %1, %2, %cst {dimension_numbers = #tpu.dot_dimension_numbers<[1], [0], [0], [1], [0, 0, 1, 1], [], []>} : vector<8x42xf32>, vector<42x60xf32>, vector<8x60xf32> -> vector<8x60xf32>
    %c0_4 = arith.constant 0 : index
    %c0_5 = arith.constant 0 : index
    %4 = vector.load %arg3[%c0_4, %c0_5] : memref<1x60xf32, #tpu.memory_space<vmem>>, vector<1x60xf32>
    %5 = vector.broadcast %4 : vector<1x60xf32> to vector<8x60xf32>
    %6 = arith.addf %3, %5 : vector<8x60xf32>
    %cst_6 = arith.constant 0.000000e+00 : f32
    %7 = vector.broadcast %cst_6 : f32 to vector<8x60xf32>
    %8 = arith.maximumf %6, %7 : vector<8x60xf32>
    %c0_7 = arith.constant 0 : index
    %c0_8 = arith.constant 0 : index
    %c0_9 = arith.constant 0 : index
    %9 = vector.load %arg4[%c0_7, %c0_8, %c0_9] : memref<1x8x60xf32, #tpu.memory_space<vmem>>, vector<1x8x60xf32>
    %10 = vector.shape_cast %9 : vector<1x8x60xf32> to vector<8x60xf32>
    %11 = vector.shape_cast %8 : vector<8x60xf32> to vector<1x8x60xf32>
    tpu.vector_store %arg4[%c0_7, %c0_8, %c0_9], %11 {strides = array<i32>} : memref<1x8x60xf32, #tpu.memory_space<vmem>>, vector<1x8x60xf32>,
    %cst_10 = arith.constant dense<0.000000e+00> : vector<60xf32>
    %12 = vector.multi_reduction <add>, %8, %cst_10 [0] : vector<8x60xf32> to vector<60xf32>
    %13 = vector.shape_cast %12 : vector<60xf32> to vector<1x60xf32>
    %c0_11 = arith.constant 0 : index
    %c0_12 = arith.constant 0 : index
    %c0_13 = arith.constant 0 : index
    %14 = vector.load %arg5[%c0_11, %c0_12, %c0_13] : memref<1x2x60xf32, #tpu.memory_space<vmem>>, vector<1x1x60xf32>
    %15 = vector.shape_cast %14 : vector<1x1x60xf32> to vector<1x60xf32>
    %16 = vector.shape_cast %13 : vector<1x60xf32> to vector<1x1x60xf32>
    tpu.vector_store %arg5[%c0_11, %c0_12, %c0_13], %16 {strides = array<i32>} : memref<1x2x60xf32, #tpu.memory_space<vmem>>, vector<1x1x60xf32>,
    %17 = arith.mulf %8, %8 : vector<8x60xf32>
    %cst_14 = arith.constant dense<0.000000e+00> : vector<60xf32>
    %18 = vector.multi_reduction <add>, %17, %cst_14 [0] : vector<8x60xf32> to vector<60xf32>
    %19 = vector.shape_cast %18 : vector<60xf32> to vector<1x60xf32>
    %c0_15 = arith.constant 0 : index
    %c1 = arith.constant 1 : index
    %c0_16 = arith.constant 0 : index
    %20 = vector.load %arg5[%c0_15, %c1, %c0_16] : memref<1x2x60xf32, #tpu.memory_space<vmem>>, vector<1x1x60xf32>
    %21 = vector.shape_cast %20 : vector<1x1x60xf32> to vector<1x60xf32>
    %22 = vector.shape_cast %19 : vector<1x60xf32> to vector<1x1x60xf32>
    tpu.vector_store %arg5[%c0_15, %c1, %c0_16], %22 {strides = array<i32>} : memref<1x2x60xf32, #tpu.memory_space<vmem>>, vector<1x1x60xf32>,
    return
  }
  func.func @transform_0(%arg0: i32) -> (i32, i32, i32) {
    %c0_i32 = arith.constant 0 : i32
    %c0_i32_0 = arith.constant 0 : i32
    %c0_i32_1 = arith.constant 0 : i32
    return %arg0, %c0_i32, %c0_i32_0 : i32, i32, i32
  }
  func.func @transform_1(%arg0: i32) -> (i32, i32) {
    %c0_i32 = arith.constant 0 : i32
    %c0_i32_0 = arith.constant 0 : i32
    %c0_i32_1 = arith.constant 0 : i32
    return %c0_i32, %c0_i32_0 : i32, i32
  }
  func.func @transform_2(%arg0: i32) -> (i32, i32) {
    %c0_i32 = arith.constant 0 : i32
    %c0_i32_0 = arith.constant 0 : i32
    %c0_i32_1 = arith.constant 0 : i32
    return %c0_i32, %c0_i32_0 : i32, i32
  }
  func.func @transform_3(%arg0: i32) -> (i32, i32, i32) {
    %c0_i32 = arith.constant 0 : i32
    %c0_i32_0 = arith.constant 0 : i32
    %c0_i32_1 = arith.constant 0 : i32
    return %arg0, %c0_i32, %c0_i32_0 : i32, i32, i32
  }
  func.func @transform_4(%arg0: i32) -> (i32, i32, i32) {
    %c0_i32 = arith.constant 0 : i32
    %c0_i32_0 = arith.constant 0 : i32
    %c0_i32_1 = arith.constant 0 : i32
    return %arg0, %c0_i32, %c0_i32_0 : i32, i32, i32
  }
}

module attributes {stable_mosaic.version = 11 : i64} {
  func.func @_attn_head_kernel(%arg0: i32, %arg1: memref<1x8x60xf32, #tpu.memory_space<vmem>>, %arg2: memref<1x60xf32, #tpu.memory_space<vmem>>, %arg3: memref<1x60xf32, #tpu.memory_space<vmem>>, %arg4: memref<60x180xf32, #tpu.memory_space<vmem>>, %arg5: memref<1x180xf32, #tpu.memory_space<vmem>>, %arg6: memref<60x2xf32, #tpu.memory_space<vmem>>, %arg7: memref<60x2xf32, #tpu.memory_space<vmem>>, %arg8: memref<1x2xf32, #tpu.memory_space<vmem>>, %arg9: memref<1x8x2xf32, #tpu.memory_space<vmem>>) attributes {dimension_semantics = [#tpu.dimension_semantics<parallel>], iteration_bounds = array<i64: 2>, scalar_prefetch = 0 : i64, scratch_operands = 0 : i64, tpu.core_type = #tpu.core_type<tc>, window_params = [{transform_indices = @transform_0, window_bounds = array<i64: 1, 8, 60>}, {pipeline_mode = #tpu.pipeline_mode<synchronous>, transform_indices = @transform_1, window_bounds = array<i64: 1, 60>}, {pipeline_mode = #tpu.pipeline_mode<synchronous>, transform_indices = @transform_2, window_bounds = array<i64: 1, 60>}, {pipeline_mode = #tpu.pipeline_mode<synchronous>, transform_indices = @transform_3, window_bounds = array<i64: 60, 180>}, {pipeline_mode = #tpu.pipeline_mode<synchronous>, transform_indices = @transform_4, window_bounds = array<i64: 1, 180>}, {pipeline_mode = #tpu.pipeline_mode<synchronous>, transform_indices = @transform_5, window_bounds = array<i64: 60, 2>}, {pipeline_mode = #tpu.pipeline_mode<synchronous>, transform_indices = @transform_6, window_bounds = array<i64: 60, 2>}, {pipeline_mode = #tpu.pipeline_mode<synchronous>, transform_indices = @transform_7, window_bounds = array<i64: 1, 2>}, {transform_indices = @transform_8, window_bounds = array<i64: 1, 8, 2>}]} {
    %c0 = arith.constant 0 : index
    %c0_0 = arith.constant 0 : index
    %c0_1 = arith.constant 0 : index
    %0 = vector.load %arg1[%c0, %c0_0, %c0_1] : memref<1x8x60xf32, #tpu.memory_space<vmem>>, vector<1x8x60xf32>
    %1 = vector.shape_cast %0 : vector<1x8x60xf32> to vector<8x60xf32>
    %c0_2 = arith.constant 0 : index
    %c0_3 = arith.constant 0 : index
    %2 = vector.load %arg2[%c0_2, %c0_3] : memref<1x60xf32, #tpu.memory_space<vmem>>, vector<1x60xf32>
    %3 = vector.broadcast %2 : vector<1x60xf32> to vector<8x60xf32>
    %4 = arith.mulf %1, %3 : vector<8x60xf32>
    %c0_4 = arith.constant 0 : index
    %c0_5 = arith.constant 0 : index
    %5 = vector.load %arg3[%c0_4, %c0_5] : memref<1x60xf32, #tpu.memory_space<vmem>>, vector<1x60xf32>
    %6 = vector.broadcast %5 : vector<1x60xf32> to vector<8x60xf32>
    %7 = arith.addf %4, %6 : vector<8x60xf32>
    %c0_6 = arith.constant 0 : index
    %c0_7 = arith.constant 0 : index
    %8 = vector.load %arg4[%c0_6, %c0_7] : memref<60x180xf32, #tpu.memory_space<vmem>>, vector<60x180xf32>
    %cst = arith.constant dense<0.000000e+00> : vector<8x180xf32>
    %9 = tpu.matmul %7, %8, %cst {dimension_numbers = #tpu.dot_dimension_numbers<[1], [0], [0], [1], [0, 0, 1, 1], [], []>} : vector<8x60xf32>, vector<60x180xf32>, vector<8x180xf32> -> vector<8x180xf32>
    %c0_8 = arith.constant 0 : index
    %c0_9 = arith.constant 0 : index
    %10 = vector.load %arg5[%c0_8, %c0_9] : memref<1x180xf32, #tpu.memory_space<vmem>>, vector<1x180xf32>
    %11 = vector.broadcast %10 : vector<1x180xf32> to vector<8x180xf32>
    %12 = arith.addf %9, %11 : vector<8x180xf32>
    %13 = vector.extract_strided_slice %12 {offsets = [0, 0], sizes = [8, 60], strides = [1, 1]} : vector<8x180xf32> to vector<8x60xf32>
    %14 = vector.extract_strided_slice %12 {offsets = [0, 60], sizes = [8, 60], strides = [1, 1]} : vector<8x180xf32> to vector<8x60xf32>
    %15 = vector.extract_strided_slice %12 {offsets = [0, 120], sizes = [8, 60], strides = [1, 1]} : vector<8x180xf32> to vector<8x60xf32>
    %16 = arith.truncf %13 : vector<8x60xf32> to vector<8x60xbf16>
    %17 = arith.truncf %14 : vector<8x60xf32> to vector<8x60xbf16>
    %cst_10 = arith.constant dense<0.000000e+00> : vector<8x8xf32>
    %18 = tpu.matmul %16, %17, %cst_10 {dimension_numbers = #tpu.dot_dimension_numbers<[1], [1], [0], [0], [0, 0, 1, 0], [], []>} : vector<8x60xbf16>, vector<8x60xbf16>, vector<8x8xf32> -> vector<8x8xf32>
    %cst_11 = arith.constant dense<0xFF800000> : vector<8xf32>
    %19 = vector.multi_reduction <maximumf>, %18, %cst_11 [1] : vector<8x8xf32> to vector<8xf32>
    %20 = vector.shape_cast %19 : vector<8xf32> to vector<8x1xf32>
    %21 = vector.broadcast %20 : vector<8x1xf32> to vector<8x8xf32>
    %22 = arith.subf %18, %21 : vector<8x8xf32>
    %23 = math.exp %22 : vector<8x8xf32>
    %cst_12 = arith.constant dense<0.000000e+00> : vector<8xf32>
    %24 = vector.multi_reduction <add>, %23, %cst_12 [1] : vector<8x8xf32> to vector<8xf32>
    %25 = vector.shape_cast %24 : vector<8xf32> to vector<8x1xf32>
    %26 = arith.truncf %23 : vector<8x8xf32> to vector<8x8xbf16>
    %27 = arith.truncf %15 : vector<8x60xf32> to vector<8x60xbf16>
    %cst_13 = arith.constant dense<0.000000e+00> : vector<8x60xf32>
    %28 = tpu.matmul %26, %27, %cst_13 {dimension_numbers = #tpu.dot_dimension_numbers<[1], [0], [0], [1], [0, 0, 1, 1], [], []>} : vector<8x8xbf16>, vector<8x60xbf16>, vector<8x60xf32> -> vector<8x60xf32>
    %29 = tpu.reciprocal %25 {approx = true} : vector<8x1xf32> -> vector<8x1xf32>
    %30 = vector.broadcast %29 : vector<8x1xf32> to vector<8x60xf32>
    %31 = arith.mulf %28, %30 : vector<8x60xf32>
    %32 = arith.addf %31, %7 : vector<8x60xf32>
    %cst_14 = arith.constant 0.000000e+00 : f32
    %33 = vector.broadcast %cst_14 : f32 to vector<8x60xf32>
    %34 = arith.maximumf %32, %33 : vector<8x60xf32>
    %cst_15 = arith.constant dense<0xFF800000> : vector<60xf32>
    %35 = vector.multi_reduction <maximumf>, %34, %cst_15 [0] : vector<8x60xf32> to vector<60xf32>
    %36 = vector.shape_cast %35 : vector<60xf32> to vector<1x60xf32>
    %c0_16 = arith.constant 0 : index
    %c0_17 = arith.constant 0 : index
    %37 = vector.load %arg6[%c0_16, %c0_17] : memref<60x2xf32, #tpu.memory_space<vmem>>, vector<60x2xf32>
    %cst_18 = arith.constant dense<0.000000e+00> : vector<8x2xf32>
    %38 = tpu.matmul %34, %37, %cst_18 {dimension_numbers = #tpu.dot_dimension_numbers<[1], [0], [0], [1], [0, 0, 1, 1], [], []>} : vector<8x60xf32>, vector<60x2xf32>, vector<8x2xf32> -> vector<8x2xf32>
    %c0_19 = arith.constant 0 : index
    %c0_20 = arith.constant 0 : index
    %39 = vector.load %arg7[%c0_19, %c0_20] : memref<60x2xf32, #tpu.memory_space<vmem>>, vector<60x2xf32>
    %cst_21 = arith.constant dense<0.000000e+00> : vector<1x2xf32>
    %40 = tpu.matmul %36, %39, %cst_21 {dimension_numbers = #tpu.dot_dimension_numbers<[1], [0], [0], [1], [0, 0, 1, 1], [], []>} : vector<1x60xf32>, vector<60x2xf32>, vector<1x2xf32> -> vector<1x2xf32>
    %41 = vector.broadcast %40 : vector<1x2xf32> to vector<8x2xf32>
    %42 = arith.addf %38, %41 : vector<8x2xf32>
    %c0_22 = arith.constant 0 : index
    %c0_23 = arith.constant 0 : index
    %43 = vector.load %arg8[%c0_22, %c0_23] : memref<1x2xf32, #tpu.memory_space<vmem>>, vector<1x2xf32>
    %44 = vector.broadcast %43 : vector<1x2xf32> to vector<8x2xf32>
    %45 = arith.addf %42, %44 : vector<8x2xf32>
    %c0_24 = arith.constant 0 : index
    %c0_25 = arith.constant 0 : index
    %c0_26 = arith.constant 0 : index
    %46 = vector.load %arg9[%c0_24, %c0_25, %c0_26] : memref<1x8x2xf32, #tpu.memory_space<vmem>>, vector<1x8x2xf32>
    %47 = vector.shape_cast %46 : vector<1x8x2xf32> to vector<8x2xf32>
    %48 = vector.shape_cast %45 : vector<8x2xf32> to vector<1x8x2xf32>
    tpu.vector_store %arg9[%c0_24, %c0_25, %c0_26], %48 {strides = array<i32>} : memref<1x8x2xf32, #tpu.memory_space<vmem>>, vector<1x8x2xf32>,
    return
  }
  func.func @transform_0(%arg0: i32) -> (i32, i32, i32) {
    %c0_i32 = arith.constant 0 : i32
    %c0_i32_0 = arith.constant 0 : i32
    %c0_i32_1 = arith.constant 0 : i32
    return %arg0, %c0_i32, %c0_i32_0 : i32, i32, i32
  }
  func.func @transform_1(%arg0: i32) -> (i32, i32) {
    %c0_i32 = arith.constant 0 : i32
    %c0_i32_0 = arith.constant 0 : i32
    %c0_i32_1 = arith.constant 0 : i32
    return %c0_i32, %c0_i32_0 : i32, i32
  }
  func.func @transform_2(%arg0: i32) -> (i32, i32) {
    %c0_i32 = arith.constant 0 : i32
    %c0_i32_0 = arith.constant 0 : i32
    %c0_i32_1 = arith.constant 0 : i32
    return %c0_i32, %c0_i32_0 : i32, i32
  }
  func.func @transform_3(%arg0: i32) -> (i32, i32) {
    %c0_i32 = arith.constant 0 : i32
    %c0_i32_0 = arith.constant 0 : i32
    %c0_i32_1 = arith.constant 0 : i32
    return %c0_i32, %c0_i32_0 : i32, i32
  }
  func.func @transform_4(%arg0: i32) -> (i32, i32) {
    %c0_i32 = arith.constant 0 : i32
    %c0_i32_0 = arith.constant 0 : i32
    %c0_i32_1 = arith.constant 0 : i32
    return %c0_i32, %c0_i32_0 : i32, i32
  }
  func.func @transform_5(%arg0: i32) -> (i32, i32) {
    %c0_i32 = arith.constant 0 : i32
    %c0_i32_0 = arith.constant 0 : i32
    %c0_i32_1 = arith.constant 0 : i32
    return %c0_i32, %c0_i32_0 : i32, i32
  }
  func.func @transform_6(%arg0: i32) -> (i32, i32) {
    %c0_i32 = arith.constant 0 : i32
    %c0_i32_0 = arith.constant 0 : i32
    %c0_i32_1 = arith.constant 0 : i32
    return %c0_i32, %c0_i32_0 : i32, i32
  }
  func.func @transform_7(%arg0: i32) -> (i32, i32) {
    %c0_i32 = arith.constant 0 : i32
    %c0_i32_0 = arith.constant 0 : i32
    %c0_i32_1 = arith.constant 0 : i32
    return %c0_i32, %c0_i32_0 : i32, i32
  }
  func.func @transform_8(%arg0: i32) -> (i32, i32, i32) {
    %c0_i32 = arith.constant 0 : i32
    %c0_i32_0 = arith.constant 0 : i32
    %c0_i32_1 = arith.constant 0 : i32
    return %arg0, %c0_i32, %c0_i32_0 : i32, i32, i32
  }
}

</mosaic_0001>

<llo_original>
// kernel: discriminator_forward.2
$region0: #{discriminator_forward.2}
  #allocation0 [shape = 'u32[]', space=smem, size = 0x4, offset = 0x4, fixed_abs, tag = 'smem constant byte address 0x4 - core index']
  #allocation1 [shape = 'u32[144,128]{1,0:T(1,128)}', space=vmem, size = 0x12000, scoped, tag = 'internal scratch']
  %s0 = inlined_call_operand.vmem [shape: f32[2,8,42], index: 0, kind: input, shape index: {}]
  %s1 = inlined_call_operand.vmem [shape: f32[42,60], index: 1, kind: input, shape index: {}]
  %s2 = inlined_call_operand.vmem [shape: f32[1,60], index: 2, kind: input, shape index: {}]
  %s3 = inlined_call_operand.vmem [shape: f32[2,8,60], index: 3, kind: output, shape index: {0}]
  %s4 = inlined_call_operand.vmem [shape: f32[2,2,60], index: 4, kind: output, shape index: {1}]
  %5 = xla_tuple %s3, %s4
  %s6 = sld [smem:[#allocation0]]
  $region53: #{discriminator_forward.2} parent=0
    _
  %s8 = ssub.s32 1, %s6
  %s9 = scalar_select 0, %s8, %s6
  loop: start=0, step=1, limit=4
  $region2: #{discriminator_forward.2} parent=0 // loop_pre_header
    _
  $region3: #{discriminator_forward.2} parent=0 // loop_header
    %s11 = sphi 0, %s15
    %p12 = scmp.ge.s32.totalorder %s11, 4
    %s21 = sphi 0, %s23
    %s24 = sphi 0, %s21
    %s25 = sphi 0, %s24
    %s41 = sphi 0, %s25
    %s45 = sphi 0, %s45
    %s47 = sphi 0, %s45
    %s48 = sphi 0, %s47
    %s62 = sphi 0, %s48
    %s66 = sphi 0, %s66
    %s68 = sphi 0, %s66
    %s69 = sphi 0, %s68
    %s83 = sphi 0, %s69
    %s89 = sphi 0, %s91
    %s92 = sphi 0, %s89
    %s93 = sphi 0, %s92
    %s109 = sphi 0, %s93
    %s115 = sphi 0, %s117
    %s118 = sphi 0, %s115
    %s119 = sphi 0, %s118
    %s135 = sphi 0, %s119
  $region4: #{discriminator_forward.2} parent=0 // loop_header_branch
    %14 = sbr.rel (%p12) target = $region8
  $region5: #{discriminator_forward.2} parent=0 // loop_body
    %s16 = ssub.s32 %s11, 1
    %s17 = ssub.s32 %s11, 2
    %s18 = sadd.s32 %s11, 1
    %s19 = ssub.s32 %s11, %s18
    %p20 = scmp.eq.s32.totalorder %s19, 0
    %s22 = sadd.s32 %s21, 1
    %s23 = scalar_select %p20, %s21, %s22
    %p26 = pneg %p20
    %p27 = scmp.eq.s32.totalorder %s11, 1
    %p28 = por %p26, %p27
    %p29 = scmp.ne.s32.totalorder %s21, %s24
    %p30 = scmp.eq.s32.totalorder %s11, 0
    %p31 = por %p29, %p30
    %p32 = scmp.ne.s32.totalorder %s21, %s24
    %p33 = scmp.eq.s32.totalorder %s16, 1
    %p34 = por %p32, %p33
    %p35 = scmp.ne.s32.totalorder %s24, %s25
    %p36 = scmp.eq.s32.totalorder %s16, 0
    %p37 = por %p35, %p36
    %p38 = scmp.ne.s32.totalorder %s24, %s25
    %p39 = scmp.eq.s32.totalorder %s17, 1
    %p40 = por %p38, %p39
    %p42 = scmp.ne.s32.totalorder %s25, %s41
    %p43 = scmp.eq.s32.totalorder %s17, 0
    %p44 = por %p42, %p43
    %s46 = sadd.s32 %s45, 1
    %p49 = scmp.eq.s32.totalorder %s11, 1
    %p50 = scmp.ne.s32.totalorder %s45, %s47
    %p51 = scmp.eq.s32.totalorder %s11, 0
    %p52 = por %p50, %p51
    %p53 = scmp.ne.s32.totalorder %s45, %s47
    %p54 = scmp.eq.s32.totalorder %s16, 1
    %p55 = por %p53, %p54
    %p56 = scmp.ne.s32.totalorder %s47, %s48
    %p57 = scmp.eq.s32.totalorder %s16, 0
    %p58 = por %p56, %p57
    %p59 = scmp.ne.s32.totalorder %s47, %s48
    %p60 = scmp.eq.s32.totalorder %s17, 1
    %p61 = por %p59, %p60
    %p63 = scmp.ne.s32.totalorder %s48, %s62
    %p64 = scmp.eq.s32.totalorder %s17, 0
    %p65 = por %p63, %p64
    %s67 = sadd.s32 %s66, 1
    %p70 = scmp.eq.s32.totalorder %s11, 1
    %p71 = scmp.ne.s32.totalorder %s66, %s68
    %p72 = scmp.eq.s32.totalorder %s11, 0
    %p73 = por %p71, %p72
    %p74 = scmp.ne.s32.totalorder %s66, %s68
    %p75 = scmp.eq.s32.totalorder %s16, 1
    %p76 = por %p74, %p75
    %p77 = scmp.ne.s32.totalorder %s68, %s69
    %p78 = scmp.eq.s32.totalorder %s16, 0
    %p79 = por %p77, %p78
    %p80 = scmp.ne.s32.totalorder %s68, %s69
    %p81 = scmp.eq.s32.totalorder %s17, 1
    %p82 = por %p80, %p81
    %p84 = scmp.ne.s32.totalorder %s69, %s83
    %p85 = scmp.eq.s32.totalorder %s17, 0
    %p86 = por %p84, %p85
    %s87 = ssub.s32 %s11, %s18
    %p88 = scmp.eq.s32.totalorder %s87, 0
    %s90 = sadd.s32 %s89, 1
    %s91 = scalar_select %p88, %s89, %s90
    %p94 = pneg %p88
    %p95 = scmp.eq.s32.totalorder %s11, 1
    %p96 = por %p94, %p95
    %p97 = scmp.ne.s32.totalorder %s89, %s92
    %p98 = scmp.eq.s32.totalorder %s11, 0
    %p99 = por %p97, %p98
    %p100 = scmp.ne.s32.totalorder %s89, %s92
    %p101 = scmp.eq.s32.totalorder %s16, 1
    %p102 = por %p100, %p101
    %p103 = scmp.ne.s32.totalorder %s92, %s93
    %p104 = scmp.eq.s32.totalorder %s16, 0
    %p105 = por %p103, %p104
    %p106 = scmp.ne.s32.totalorder %s92, %s93
    %p107 = scmp.eq.s32.totalorder %s17, 1
    %p108 = por %p106, %p107
    %p110 = scmp.ne.s32.totalorder %s93, %s109
    %p111 = scmp.eq.s32.totalorder %s17, 0
    %p112 = por %p110, %p111
    %s113 = ssub.s32 %s11, %s18
    %p114 = scmp.eq.s32.totalorder %s113, 0
    %s116 = sadd.s32 %s115, 1
    %s117 = scalar_select %p114, %s115, %s116
    %p120 = pneg %p114
    %p121 = scmp.eq.s32.totalorder %s11, 1
    %p122 = por %p120, %p121
    %p123 = scmp.ne.s32.totalorder %s115, %s118
    %p124 = scmp.eq.s32.totalorder %s11, 0
    %p125 = por %p123, %p124
    %p126 = scmp.ne.s32.totalorder %s115, %s118
    %p127 = scmp.eq.s32.totalorder %s16, 1
    %p128 = por %p126, %p127
    %p129 = scmp.ne.s32.totalorder %s118, %s119
    %p130 = scmp.eq.s32.totalorder %s16, 0
    %p131 = por %p129, %p130
    %p132 = scmp.ne.s32.totalorder %s118, %s119
    %p133 = scmp.eq.s32.totalorder %s17, 1
    %p134 = por %p132, %p133
    %p136 = scmp.ne.s32.totalorder %s119, %s135
    %p137 = scmp.eq.s32.totalorder %s17, 0
    %p138 = por %p136, %p137
    %p139 = scmp.le.s32.totalorder 1, %s11
    %p140 = scmp.lt.s32.totalorder %s11, 3
    %p141 = pnand %p139, %p140
    %p142 = pneg %p141
    // Predicated region
    $region9: #{discriminator_forward.2} parent=5 // pred_check
      _
    $region10: #{discriminator_forward.2} parent=5 // pred_check_branch
      %144 = sbr.rel (%p141) target = $region12
    $region11: #{discriminator_forward.2} parent=5 // pred_region
      %s145 = ssub.s32 %s11, 1
      // Predicated region
      $region13: #{discriminator_forward.2} parent=11 // pred_check
        %p146 = pneg %p58
      $region14: #{discriminator_forward.2} parent=11 // pred_check_branch
        %148 = sbr.rel (%p146) target = $region16
      $region15: #{discriminator_forward.2} parent=11 // pred_region
        _
      $region16: #{discriminator_forward.2} parent=11 // pred_fallthru
        _
      // Predicated region
      $region17: #{discriminator_forward.2} parent=11 // pred_check
        %p149 = pneg %p79
      $region18: #{discriminator_forward.2} parent=11 // pred_check_branch
        %151 = sbr.rel (%p149) target = $region20
      $region19: #{discriminator_forward.2} parent=11 // pred_region
        _
      $region20: #{discriminator_forward.2} parent=11 // pred_fallthru
        _
    $region12: #{discriminator_forward.2} parent=5 // pred_fallthru
      _
    %p152 = scmp.lt.s32.totalorder %s11, 2
    // Predicated region
    $region21: #{discriminator_forward.2} parent=5 // pred_check
      %p153 = pneg %p152
    $region22: #{discriminator_forward.2} parent=5 // pred_check_branch
      %155 = sbr.rel (%p153) target = $region24
    $region23: #{discriminator_forward.2} parent=5 // pred_region
      // Predicated region
      $region25: #{discriminator_forward.2} parent=23 // pred_check
        %p156 = pneg %p31
      $region26: #{discriminator_forward.2} parent=23 // pred_check_branch
        %158 = sbr.rel (%p156) target = $region28
      $region27: #{discriminator_forward.2} parent=23 // pred_region
        %p159 = scmp.lt.s32.totalorder %s11, 1
        %s160 = scalar_select %p159, %s11, 1
        %s161 = smul.addr %s160, 8
        %s162 = scalar_lea.vmem %s0, %s161
      $region28: #{discriminator_forward.2} parent=23 // pred_fallthru
        _
    $region24: #{discriminator_forward.2} parent=5 // pred_fallthru
      _
    %p163 = scmp.le.s32.totalorder 1, %s11
    %p164 = scmp.lt.s32.totalorder %s11, 3
    %p165 = pnand %p163, %p164
    %p166 = pneg %p165
    // Predicated region
    $region29: #{discriminator_forward.2} parent=5 // pred_check
      _
    $region30: #{discriminator_forward.2} parent=5 // pred_check_branch
      %168 = sbr.rel (%p165) target = $region32
    $region31: #{discriminator_forward.2} parent=5 // pred_region
      %s169 = ssub.s32 %s11, 1
      %p170 = scmp.lt.s32.totalorder %s16, 1
      %s171 = scalar_select %p170, %s16, 1
      %s172 = smul.addr %s171, 8
      %s173 = scalar_lea.vmem %s0, %s172
      %p174 = pneg %p37
      %p175 = pneg %p34
      %p176 = pneg %p58
      %p177 = pneg %p55
      %p178 = pneg %p79
      %p179 = pneg %p76
      %p180 = pneg %p105
      %p181 = pneg %p102
      %p182 = scmp.lt.s32.totalorder %s16, 1
      %s183 = scalar_select %p182, %s16, 1
      %s184 = smul.addr %s183, 8
      %s185 = scalar_lea.vmem %s3, %s184
      %p186 = pneg %p131
      %p187 = pneg %p128
      %p188 = scmp.lt.s32.totalorder %s16, 1
      %s189 = scalar_select %p188, %s16, 1
      %s190 = smul.addr %s189, 2
      %s191 = scalar_lea.vmem %s4, %s190
      %p192 = scmp.lt.s32.totalorder %s16, 1
      %s193 = scalar_select %p192, %s16, 1
      %s194 = smul.addr %s193, 8
      %s195 = scalar_lea.vmem %s0, %s194
      %p196 = scmp.lt.s32.totalorder %s16, 1
      %s197 = scalar_select %p196, %s16, 1
      %s198 = smul.addr %s197, 8
      %s199 = scalar_lea.vmem %s3, %s198
      %p200 = scmp.lt.s32.totalorder %s16, 1
      %s201 = scalar_select %p200, %s16, 1
      %s202 = smul.addr %s201, 2
      %s203 = scalar_lea.vmem %s4, %s202
      %v204 = vld [vmem:[%s195] sm:$0xff]
      %v205 = vld [vmem:[%s1] sm:$0xff]
      %v206 = vld [vmem:[%s1 + $0x8] sm:$0xff]
      %v207 = vld [vmem:[%s1 + $0x10] sm:$0xff]
      %v208 = vld [vmem:[%s1 + $0x18] sm:$0xff]
      %v209 = vld [vmem:[%s1 + $0x20] sm:$0xff]
      %v210 = vld [vmem:[%s1 + $0x28] sm:$0x3]
      %v211 = vld [vmem:[%s2] sm:$0x1]
      %v213 = vlaneseq
      %v214 = vshrl.u32 %v213, 7
      %v215 = vsub.s32 0, %v214
      %v216 = vrot.slane %v211, %v215
      %vm218 = vcmask 343040
      %v220 = vsel %vm218, %v204, 0
      %vm222 = vcmask 1041408
      %v224 = vsel %vm222, %v210, 0
      %226 = vmatprep.subr.mxu0 0.0
      %227 = vmatpush1.msra.mxu0 %v205
      %228 = vmatprep.subr.mxu0 0.0
      %229 = vmatpush1.msra.mxu0 %v206
      %230 = vmatprep.subr.mxu0 0.0
      %231 = vmatpush1.msra.mxu0 %v207
      %232 = vmatprep.subr.mxu0 0.0
      %233 = vmatpush1.msra.mxu0 %v208
      %234 = vmatprep.subr.mxu0 0.0
      %235 = vmatpush1.msra.mxu0 %v209
      %236 = vmatprep.subr.mxu0 0.0
      %237 = vmatpush1.msra.mxu0 %v224
      %238 = vmatprep.subr.mxu0 0.0
      %239 = vmatpush1.msra.mxu0 0.0
      %240 = vmatprep.subr.mxu0 0.0
      %241 = vmatpush1.msra.mxu0 0.0
      %242 = vmatprep.subr.mxu0 0.0
      %243 = vmatpush1.msra.mxu0 0.0
      %244 = vmatprep.subr.mxu0 0.0
      %245 = vmatpush1.msra.mxu0 0.0
      %246 = vmatprep.subr.mxu0 0.0
      %247 = vmatpush1.msra.mxu0 0.0
      %248 = vmatprep.subr.mxu0 0.0
      %249 = vmatpush1.msra.mxu0 0.0
      %250 = vmatprep.subr.mxu0 0.0
      %251 = vmatpush1.msra.mxu0 0.0
      %252 = vmatprep.subr.mxu0 0.0
      %253 = vmatpush1.msra.mxu0 0.0
      %254 = vmatprep.subr.mxu0 0.0
      %255 = vmatpush1.msra.mxu0 0.0
      %256 = vmatprep.subr.mxu0 0.0
      %257 = vmatpush1.msra.mxu0 0.0
      %258 = vmatprep.subr.mxu0 0.0
      %259 = vmatpush1.msra.mxu0 0.0
      %260 = vmatprep.subr.mxu0 0.0
      %261 = vmatpush1.msra.mxu0 0.0
      %262 = vmatprep.subr.mxu0 0.0
      %263 = vmatpush1.msra.mxu0 0.0
      %264 = vmatprep.subr.mxu0 0.0
      %265 = vmatpush1.msra.mxu0 0.0
      %266 = vmatprep.subr.mxu0 0.0
      %267 = vmatpush1.msra.mxu0 0.0
      %268 = vmatprep.subr.mxu0 0.0
      %269 = vmatpush1.msra.mxu0 0.0
      %270 = vmatprep.subr.mxu0 0.0
      %271 = vmatpush1.msra.mxu0 0.0
      %272 = vmatprep.subr.mxu0 0.0
      %273 = vmatpush1.msra.mxu0 0.0
      %274 = vmatprep.subr.mxu0 0.0
      %275 = vmatpush1.msra.mxu0 0.0
      %276 = vmatprep.subr.mxu0 0.0
      %277 = vmatpush1.msra.mxu0 0.0
      %278 = vmatprep.subr.mxu0 0.0
      %279 = vmatpush1.msra.mxu0 0.0
      %280 = vmatprep.subr.mxu0 0.0
      %281 = vmatpush1.msra.mxu0 0.0
      %282 = vmatprep.subr.mxu0 0.0
      %283 = vmatpush1.msra.mxu0 0.0
      %284 = vmatprep.subr.mxu0 0.0
      %285 = vmatpush1.msra.mxu0 0.0
      %286 = vmatprep.subr.mxu0 0.0
      %287 = vmatpush1.msra.mxu0 0.0
      %288 = vmatprep.subr.mxu0 0.0
      %289 = vmatpush1.msra.mxu0 0.0
      %290 = vmatprep.mubr.f32.mxu0 0.0
      %291 = vmatmul.mubr.f32.gmra.mrb[0].mxu0 %v220
      %v292 = vpop.f32.mrb[0].mxu0
      %v293 = vadd.f32 %v216, %v292
      %v294 = vpop.f32.mrb[0].mxu0
      %295 = vdwg.mxu0
      %v296 = vmax.f32 %v293, 0.0
      %vm297 = vcmask 490496
      %298 = vst.msk [vmem:[%s199] sm:$0xff] %vm297, %v296
      %v299 = vsel %vm297, %v296, 0.0
      %v300 = vrot.slane %v299, 4
      %v301 = vadd.f32 %v299, %v300
      %v302 = vrot.slane %v301, 2
      %v303 = vadd.f32 %v301, %v302
      %v304 = vrot.slane %v303, 1
      %v305 = vadd.f32 %v303, %v304
      %vm306 = vcmask 483328
      %307 = vst.msk [vmem:[%s203] sm:$0x1] %vm306, %v305
      %v308 = vmul.f32 %v296, %v296
      %v309 = vsel %vm297, %v308, 0.0
      %v310 = vrot.slane %v309, 4
      %v311 = vadd.f32 %v309, %v310
      %v312 = vrot.slane %v311, 2
      %v313 = vadd.f32 %v311, %v312
      %v314 = vrot.slane %v313, 1
      %v315 = vadd.f32 %v313, %v314
      %316 = vst.msk [vmem:[%s203 + $0x1] sm:$0x1] %vm306, %v315
      %p317 = scmp.lt.s32.totalorder %s16, 1
      %s318 = scalar_select %p317, %s16, 1
      %s319 = smul.addr %s318, 8
      %s320 = scalar_lea.vmem %s3, %s319
      %p321 = scmp.lt.s32.totalorder %s16, 1
      %s322 = scalar_select %p321, %s16, 1
      %s323 = smul.addr %s322, 2
      %s324 = scalar_lea.vmem %s4, %s323
      // Predicated region
      $region33: #{discriminator_forward.2} parent=31 // pred_check
        %p325 = pneg %p102
      $region34: #{discriminator_forward.2} parent=31 // pred_check_branch
        %327 = sbr.rel (%p325) target = $region36
      $region35: #{discriminator_forward.2} parent=31 // pred_region
        _
      $region36: #{discriminator_forward.2} parent=31 // pred_fallthru
        _
      // Predicated region
      $region37: #{discriminator_forward.2} parent=31 // pred_check
        %p328 = pneg %p128
      $region38: #{discriminator_forward.2} parent=31 // pred_check_branch
        %330 = sbr.rel (%p328) target = $region40
      $region39: #{discriminator_forward.2} parent=31 // pred_region
        _
      $region40: #{discriminator_forward.2} parent=31 // pred_fallthru
        _
    $region32: #{discriminator_forward.2} parent=5 // pred_fallthru
      _
    %p331 = scmp.le.s32.totalorder 2, %s11
    // Predicated region
    $region41: #{discriminator_forward.2} parent=5 // pred_check
      %p332 = pneg %p331
    $region42: #{discriminator_forward.2} parent=5 // pred_check_branch
      %334 = sbr.rel (%p332) target = $region44
    $region43: #{discriminator_forward.2} parent=5 // pred_region
      %s335 = ssub.s32 %s11, 2
      // Predicated region
      $region45: #{discriminator_forward.2} parent=43 // pred_check
        %p336 = pneg %p108
      $region46: #{discriminator_forward.2} parent=43 // pred_check_branch
        %338 = sbr.rel (%p336) target = $region48
      $region47: #{discriminator_forward.2} parent=43 // pred_region
        %p339 = scmp.lt.s32.totalorder %s17, 1
        %s340 = scalar_select %p339, %s17, 1
        %s341 = smul.addr %s340, 8
        %s342 = scalar_lea.vmem %s3, %s341
      $region48: #{discriminator_forward.2} parent=43 // pred_fallthru
        _
      // Predicated region
      $region49: #{discriminator_forward.2} parent=43 // pred_check
        %p343 = pneg %p134
      $region50: #{discriminator_forward.2} parent=43 // pred_check_branch
        %345 = sbr.rel (%p343) target = $region52
      $region51: #{discriminator_forward.2} parent=43 // pred_region
        %p346 = scmp.lt.s32.totalorder %s17, 1
        %s347 = scalar_select %p346, %s17, 1
        %s348 = smul.addr %s347, 2
        %s349 = scalar_lea.vmem %s4, %s348
      $region52: #{discriminator_forward.2} parent=43 // pred_fallthru
        _
    $region44: #{discriminator_forward.2} parent=5 // pred_fallthru
      _
  $region6: #{discriminator_forward.2} parent=0 // loop_footer
    %s15 = sadd.s32 1, %s11
  $region7: #{discriminator_forward.2} parent=0 // loop_footer_branch
    %10 = sbr.rel target = $region3
  $region8: #{discriminator_forward.2} parent=0 // loop_exit
    _

// kernel: discriminator_forward.3
$region0: #{discriminator_forward.3}
  #allocation0 [shape = 'u32[]', space=smem, size = 0x4, offset = 0x4, fixed_abs, tag = 'smem constant byte address 0x4 - core index']
  #allocation1 [shape = 'u32[144,128]{1,0:T(1,128)}', space=vmem, size = 0x12000, scoped, tag = 'internal scratch']
  %s0 = inlined_call_operand.vmem [shape: f32[2,8,60], index: 0, kind: input, shape index: {}]
  %s1 = inlined_call_operand.vmem [shape: f32[1,60], index: 1, kind: input, shape index: {}]
  %s2 = inlined_call_operand.vmem [shape: f32[1,60], index: 2, kind: input, shape index: {}]
  %s3 = inlined_call_operand.vmem [shape: f32[60,180], index: 3, kind: input, shape index: {}]
  %s4 = inlined_call_operand.vmem [shape: f32[1,180], index: 4, kind: input, shape index: {}]
  %s5 = inlined_call_operand.vmem [shape: f32[60,2], index: 5, kind: input, shape index: {}]
  %s6 = inlined_call_operand.vmem [shape: f32[60,2], index: 6, kind: input, shape index: {}]
  %s7 = inlined_call_operand.vmem [shape: f32[1,2], index: 7, kind: input, shape index: {}]
  %s8 = inlined_call_operand.vmem [shape: f32[2,8,2], index: 8, kind: output, shape index: {}]
  %s9 = sld [smem:[#allocation0]]
  $region65: #{discriminator_forward.3} parent=0
    _
  %s11 = ssub.s32 1, %s9
  %s12 = scalar_select 0, %s11, %s9
  loop: start=0, step=1, limit=4
  $region2: #{discriminator_forward.3} parent=0 // loop_pre_header
    _
  $region3: #{discriminator_forward.3} parent=0 // loop_header
    %s14 = sphi 0, %s18
    %p15 = scmp.ge.s32.totalorder %s14, 4
    %s24 = sphi 0, %s26
    %s27 = sphi 0, %s24
    %s28 = sphi 0, %s27
    %s44 = sphi 0, %s28
    %s48 = sphi 0, %s48
    %s50 = sphi 0, %s48
    %s51 = sphi 0, %s50
    %s65 = sphi 0, %s51
    %s69 = sphi 0, %s69
    %s71 = sphi 0, %s69
    %s72 = sphi 0, %s71
    %s86 = sphi 0, %s72
    %s90 = sphi 0, %s90
    %s92 = sphi 0, %s90
    %s93 = sphi 0, %s92
    %s107 = sphi 0, %s93
    %s111 = sphi 0, %s111
    %s113 = sphi 0, %s111
    %s114 = sphi 0, %s113
    %s128 = sphi 0, %s114
    %s132 = sphi 0, %s132
    %s134 = sphi 0, %s132
    %s135 = sphi 0, %s134
    %s149 = sphi 0, %s135
    %s153 = sphi 0, %s153
    %s155 = sphi 0, %s153
    %s156 = sphi 0, %s155
    %s170 = sphi 0, %s156
    %s174 = sphi 0, %s174
    %s176 = sphi 0, %s174
    %s177 = sphi 0, %s176
    %s191 = sphi 0, %s177
    %s197 = sphi 0, %s199
    %s200 = sphi 0, %s197
    %s201 = sphi 0, %s200
    %s217 = sphi 0, %s201
  $region4: #{discriminator_forward.3} parent=0 // loop_header_branch
    %17 = sbr.rel (%p15) target = $region8
  $region5: #{discriminator_forward.3} parent=0 // loop_body
    %s19 = ssub.s32 %s14, 1
    %s20 = ssub.s32 %s14, 2
    %s21 = sadd.s32 %s14, 1
    %s22 = ssub.s32 %s14, %s21
    %p23 = scmp.eq.s32.totalorder %s22, 0
    %s25 = sadd.s32 %s24, 1
    %s26 = scalar_select %p23, %s24, %s25
    %p29 = pneg %p23
    %p30 = scmp.eq.s32.totalorder %s14, 1
    %p31 = por %p29, %p30
    %p32 = scmp.ne.s32.totalorder %s24, %s27
    %p33 = scmp.eq.s32.totalorder %s14, 0
    %p34 = por %p32, %p33
    %p35 = scmp.ne.s32.totalorder %s24, %s27
    %p36 = scmp.eq.s32.totalorder %s19, 1
    %p37 = por %p35, %p36
    %p38 = scmp.ne.s32.totalorder %s27, %s28
    %p39 = scmp.eq.s32.totalorder %s19, 0
    %p40 = por %p38, %p39
    %p41 = scmp.ne.s32.totalorder %s27, %s28
    %p42 = scmp.eq.s32.totalorder %s20, 1
    %p43 = por %p41, %p42
    %p45 = scmp.ne.s32.totalorder %s28, %s44
    %p46 = scmp.eq.s32.totalorder %s20, 0
    %p47 = por %p45, %p46
    %s49 = sadd.s32 %s48, 1
    %p52 = scmp.eq.s32.totalorder %s14, 1
    %p53 = scmp.ne.s32.totalorder %s48, %s50
    %p54 = scmp.eq.s32.totalorder %s14, 0
    %p55 = por %p53, %p54
    %p56 = scmp.ne.s32.totalorder %s48, %s50
    %p57 = scmp.eq.s32.totalorder %s19, 1
    %p58 = por %p56, %p57
    %p59 = scmp.ne.s32.totalorder %s50, %s51
    %p60 = scmp.eq.s32.totalorder %s19, 0
    %p61 = por %p59, %p60
    %p62 = scmp.ne.s32.totalorder %s50, %s51
    %p63 = scmp.eq.s32.totalorder %s20, 1
    %p64 = por %p62, %p63
    %p66 = scmp.ne.s32.totalorder %s51, %s65
    %p67 = scmp.eq.s32.totalorder %s20, 0
    %p68 = por %p66, %p67
    %s70 = sadd.s32 %s69, 1
    %p73 = scmp.eq.s32.totalorder %s14, 1
    %p74 = scmp.ne.s32.totalorder %s69, %s71
    %p75 = scmp.eq.s32.totalorder %s14, 0
    %p76 = por %p74, %p75
    %p77 = scmp.ne.s32.totalorder %s69, %s71
    %p78 = scmp.eq.s32.totalorder %s19, 1
    %p79 = por %p77, %p78
    %p80 = scmp.ne.s32.totalorder %s71, %s72
    %p81 = scmp.eq.s32.totalorder %s19, 0
    %p82 = por %p80, %p81
    %p83 = scmp.ne.s32.totalorder %s71, %s72
    %p84 = scmp.eq.s32.totalorder %s20, 1
    %p85 = por %p83, %p84
    %p87 = scmp.ne.s32.totalorder %s72, %s86
    %p88 = scmp.eq.s32.totalorder %s20, 0
    %p89 = por %p87, %p88
    %s91 = sadd.s32 %s90, 1
    %p94 = scmp.eq.s32.totalorder %s14, 1
    %p95 = scmp.ne.s32.totalorder %s90, %s92
    %p96 = scmp.eq.s32.totalorder %s14, 0
    %p97 = por %p95, %p96
    %p98 = scmp.ne.s32.totalorder %s90, %s92
    %p99 = scmp.eq.s32.totalorder %s19, 1
    %p100 = por %p98, %p99
    %p101 = scmp.ne.s32.totalorder %s92, %s93
    %p102 = scmp.eq.s32.totalorder %s19, 0
    %p103 = por %p101, %p102
    %p104 = scmp.ne.s32.totalorder %s92, %s93
    %p105 = scmp.eq.s32.totalorder %s20, 1
    %p106 = por %p104, %p105
    %p108 = scmp.ne.s32.totalorder %s93, %s107
    %p109 = scmp.eq.s32.totalorder %s20, 0
    %p110 = por %p108, %p109
    %s112 = sadd.s32 %s111, 1
    %p115 = scmp.eq.s32.totalorder %s14, 1
    %p116 = scmp.ne.s32.totalorder %s111, %s113
    %p117 = scmp.eq.s32.totalorder %s14, 0
    %p118 = por %p116, %p117
    %p119 = scmp.ne.s32.totalorder %s111, %s113
    %p120 = scmp.eq.s32.totalorder %s19, 1
    %p121 = por %p119, %p120
    %p122 = scmp.ne.s32.totalorder %s113, %s114
    %p123 = scmp.eq.s32.totalorder %s19, 0
    %p124 = por %p122, %p123
    %p125 = scmp.ne.s32.totalorder %s113, %s114
    %p126 = scmp.eq.s32.totalorder %s20, 1
    %p127 = por %p125, %p126
    %p129 = scmp.ne.s32.totalorder %s114, %s128
    %p130 = scmp.eq.s32.totalorder %s20, 0
    %p131 = por %p129, %p130
    %s133 = sadd.s32 %s132, 1
    %p136 = scmp.eq.s32.totalorder %s14, 1
    %p137 = scmp.ne.s32.totalorder %s132, %s134
    %p138 = scmp.eq.s32.totalorder %s14, 0
    %p139 = por %p137, %p138
    %p140 = scmp.ne.s32.totalorder %s132, %s134
    %p141 = scmp.eq.s32.totalorder %s19, 1
    %p142 = por %p140, %p141
    %p143 = scmp.ne.s32.totalorder %s134, %s135
    %p144 = scmp.eq.s32.totalorder %s19, 0
    %p145 = por %p143, %p144
    %p146 = scmp.ne.s32.totalorder %s134, %s135
    %p147 = scmp.eq.s32.totalorder %s20, 1
    %p148 = por %p146, %p147
    %p150 = scmp.ne.s32.totalorder %s135, %s149
    %p151 = scmp.eq.s32.totalorder %s20, 0
    %p152 = por %p150, %p151
    %s154 = sadd.s32 %s153, 1
    %p157 = scmp.eq.s32.totalorder %s14, 1
    %p158 = scmp.ne.s32.totalorder %s153, %s155
    %p159 = scmp.eq.s32.totalorder %s14, 0
    %p160 = por %p158, %p159
    %p161 = scmp.ne.s32.totalorder %s153, %s155
    %p162 = scmp.eq.s32.totalorder %s19, 1
    %p163 = por %p161, %p162
    %p164 = scmp.ne.s32.totalorder %s155, %s156
    %p165 = scmp.eq.s32.totalorder %s19, 0
    %p166 = por %p164, %p165
    %p167 = scmp.ne.s32.totalorder %s155, %s156
    %p168 = scmp.eq.s32.totalorder %s20, 1
    %p169 = por %p167, %p168
    %p171 = scmp.ne.s32.totalorder %s156, %s170
    %p172 = scmp.eq.s32.totalorder %s20, 0
    %p173 = por %p171, %p172
    %s175 = sadd.s32 %s174, 1
    %p178 = scmp.eq.s32.totalorder %s14, 1
    %p179 = scmp.ne.s32.totalorder %s174, %s176
    %p180 = scmp.eq.s32.totalorder %s14, 0
    %p181 = por %p179, %p180
    %p182 = scmp.ne.s32.totalorder %s174, %s176
    %p183 = scmp.eq.s32.totalorder %s19, 1
    %p184 = por %p182, %p183
    %p185 = scmp.ne.s32.totalorder %s176, %s177
    %p186 = scmp.eq.s32.totalorder %s19, 0
    %p187 = por %p185, %p186
    %p188 = scmp.ne.s32.totalorder %s176, %s177
    %p189 = scmp.eq.s32.totalorder %s20, 1
    %p190 = por %p188, %p189
    %p192 = scmp.ne.s32.totalorder %s177, %s191
    %p193 = scmp.eq.s32.totalorder %s20, 0
    %p194 = por %p192, %p193
    %s195 = ssub.s32 %s14, %s21
    %p196 = scmp.eq.s32.totalorder %s195, 0
    %s198 = sadd.s32 %s197, 1
    %s199 = scalar_select %p196, %s197, %s198
    %p202 = pneg %p196
    %p203 = scmp.eq.s32.totalorder %s14, 1
    %p204 = por %p202, %p203
    %p205 = scmp.ne.s32.totalorder %s197, %s200
    %p206 = scmp.eq.s32.totalorder %s14, 0
    %p207 = por %p205, %p206
    %p208 = scmp.ne.s32.totalorder %s197, %s200
    %p209 = scmp.eq.s32.totalorder %s19, 1
    %p210 = por %p208, %p209
    %p211 = scmp.ne.s32.totalorder %s200, %s201
    %p212 = scmp.eq.s32.totalorder %s19, 0
    %p213 = por %p211, %p212
    %p214 = scmp.ne.s32.totalorder %s200, %s201
    %p215 = scmp.eq.s32.totalorder %s20, 1
    %p216 = por %p214, %p215
    %p218 = scmp.ne.s32.totalorder %s201, %s217
    %p219 = scmp.eq.s32.totalorder %s20, 0
    %p220 = por %p218, %p219
    %p221 = scmp.le.s32.totalorder 1, %s14
    %p222 = scmp.lt.s32.totalorder %s14, 3
    %p223 = pnand %p221, %p222
    %p224 = pneg %p223
    // Predicated region
    $region9: #{discriminator_forward.3} parent=5 // pred_check
      _
    $region10: #{discriminator_forward.3} parent=5 // pred_check_branch
      %226 = sbr.rel (%p223) target = $region12
    $region11: #{discriminator_forward.3} parent=5 // pred_region
      %s227 = ssub.s32 %s14, 1
      // Predicated region
      $region13: #{discriminator_forward.3} parent=11 // pred_check
        %p228 = pneg %p61
      $region14: #{discriminator_forward.3} parent=11 // pred_check_branch
        %230 = sbr.rel (%p228) target = $region16
      $region15: #{discriminator_forward.3} parent=11 // pred_region
        _
      $region16: #{discriminator_forward.3} parent=11 // pred_fallthru
        _
      // Predicated region
      $region17: #{discriminator_forward.3} parent=11 // pred_check
        %p231 = pneg %p82
      $region18: #{discriminator_forward.3} parent=11 // pred_check_branch
        %233 = sbr.rel (%p231) target = $region20
      $region19: #{discriminator_forward.3} parent=11 // pred_region
        _
      $region20: #{discriminator_forward.3} parent=11 // pred_fallthru
        _
      // Predicated region
      $region21: #{discriminator_forward.3} parent=11 // pred_check
        %p234 = pneg %p103
      $region22: #{discriminator_forward.3} parent=11 // pred_check_branch
        %236 = sbr.rel (%p234) target = $region24
      $region23: #{discriminator_forward.3} parent=11 // pred_region
        _
      $region24: #{discriminator_forward.3} parent=11 // pred_fallthru
        _
      // Predicated region
      $region25: #{discriminator_forward.3} parent=11 // pred_check
        %p237 = pneg %p124
      $region26: #{discriminator_forward.3} parent=11 // pred_check_branch
        %239 = sbr.rel (%p237) target = $region28
      $region27: #{discriminator_forward.3} parent=11 // pred_region
        _
      $region28: #{discriminator_forward.3} parent=11 // pred_fallthru
        _
      // Predicated region
      $region29: #{discriminator_forward.3} parent=11 // pred_check
        %p240 = pneg %p145
      $region30: #{discriminator_forward.3} parent=11 // pred_check_branch
        %242 = sbr.rel (%p240) target = $region32
      $region31: #{discriminator_forward.3} parent=11 // pred_region
        _
      $region32: #{discriminator_forward.3} parent=11 // pred_fallthru
        _
      // Predicated region
      $region33: #{discriminator_forward.3} parent=11 // pred_check
        %p243 = pneg %p166
      $region34: #{discriminator_forward.3} parent=11 // pred_check_branch
        %245 = sbr.rel (%p243) target = $region36
      $region35: #{discriminator_forward.3} parent=11 // pred_region
        _
      $region36: #{discriminator_forward.3} parent=11 // pred_fallthru
        _
      // Predicated region
      $region37: #{discriminator_forward.3} parent=11 // pred_check
        %p246 = pneg %p187
      $region38: #{discriminator_forward.3} parent=11 // pred_check_branch
        %248 = sbr.rel (%p246) target = $region40
      $region39: #{discriminator_forward.3} parent=11 // pred_region
        _
      $region40: #{discriminator_forward.3} parent=11 // pred_fallthru
        _
    $region12: #{discriminator_forward.3} parent=5 // pred_fallthru
      _
    %p249 = scmp.lt.s32.totalorder %s14, 2
    // Predicated region
    $region41: #{discriminator_forward.3} parent=5 // pred_check
      %p250 = pneg %p249
    $region42: #{discriminator_forward.3} parent=5 // pred_check_branch
      %252 = sbr.rel (%p250) target = $region44
    $region43: #{discriminator_forward.3} parent=5 // pred_region
      // Predicated region
      $region45: #{discriminator_forward.3} parent=43 // pred_check
        %p253 = pneg %p34
      $region46: #{discriminator_forward.3} parent=43 // pred_check_branch
        %255 = sbr.rel (%p253) target = $region48
      $region47: #{discriminator_forward.3} parent=43 // pred_region
        %p256 = scmp.lt.s32.totalorder %s14, 1
        %s257 = scalar_select %p256, %s14, 1
        %s258 = smul.addr %s257, 8
        %s259 = scalar_lea.vmem %s0, %s258
      $region48: #{discriminator_forward.3} parent=43 // pred_fallthru
        _
    $region44: #{discriminator_forward.3} parent=5 // pred_fallthru
      _
    %p260 = scmp.le.s32.totalorder 1, %s14
    %p261 = scmp.lt.s32.totalorder %s14, 3
    %p262 = pnand %p260, %p261
    %p263 = pneg %p262
    // Predicated region
    $region49: #{discriminator_forward.3} parent=5 // pred_check
      _
    $region50: #{discriminator_forward.3} parent=5 // pred_check_branch
      %265 = sbr.rel (%p262) target = $region52
    $region51: #{discriminator_forward.3} parent=5 // pred_region
      %s266 = ssub.s32 %s14, 1
      %p267 = scmp.lt.s32.totalorder %s19, 1
      %s268 = scalar_select %p267, %s19, 1
      %s269 = smul.addr %s268, 8
      %s270 = scalar_lea.vmem %s0, %s269
      %p271 = pneg %p40
      %p272 = pneg %p37
      %p273 = pneg %p61
      %p274 = pneg %p58
      %p275 = pneg %p82
      %p276 = pneg %p79
      %p277 = pneg %p103
      %p278 = pneg %p100
      %p279 = pneg %p124
      %p280 = pneg %p121
      %p281 = pneg %p145
      %p282 = pneg %p142
      %p283 = pneg %p166
      %p284 = pneg %p163
      %p285 = pneg %p187
      %p286 = pneg %p184
      %p287 = pneg %p213
      %p288 = pneg %p210
      %p289 = scmp.lt.s32.totalorder %s19, 1
      %s290 = scalar_select %p289, %s19, 1
      %s291 = smul.addr %s290, 8
      %s292 = scalar_lea.vmem %s8, %s291
      %p293 = scmp.lt.s32.totalorder %s19, 1
      %s294 = scalar_select %p293, %s19, 1
      %s295 = smul.addr %s294, 8
      %s296 = scalar_lea.vmem %s0, %s295
      %p297 = scmp.lt.s32.totalorder %s19, 1
      %s298 = scalar_select %p297, %s19, 1
      %s299 = smul.addr %s298, 8
      %s300 = scalar_lea.vmem %s8, %s299
      %v302 = vld [vmem:[%s296] sm:$0xff]
      %v303 = vld [vmem:[%s1] sm:$0x1]
      %v305 = vlaneseq
      %v306 = vshrl.u32 %v305, 7
      %v307 = vsub.s32 0, %v306
      %v308 = vrot.slane %v303, %v307
      %v310 = vmul.f32 %v302, %v308
      %v311 = vld [vmem:[%s2] sm:$0x1]
      %v313 = vlaneseq
      %v314 = vshrl.u32 %v313, 7
      %v315 = vsub.s32 0, %v314
      %v316 = vrot.slane %v311, %v315
      %v318 = vadd.f32 %v310, %v316
      %v319 = vld [vmem:[%s3] sm:$0xff]
      %v320 = vld [vmem:[%s3 + $0x8] sm:$0xff]
      %v321 = vld [vmem:[%s3 + $0x10] sm:$0xff]
      %v322 = vld [vmem:[%s3 + $0x18] sm:$0xff]
      %v323 = vld [vmem:[%s3 + $0x20] sm:$0xff]
      %v324 = vld [vmem:[%s3 + $0x28] sm:$0xff]
      %v325 = vld [vmem:[%s3 + $0x30] sm:$0xff]
      %v326 = vld [vmem:[%s3 + $0x38] sm:$0xff]
      %v327 = vld [vmem:[%s3 + $0x40] sm:$0xff]
      %v328 = vld [vmem:[%s3 + $0x48] sm:$0xff]
      %v329 = vld [vmem:[%s3 + $0x50] sm:$0xff]
      %v330 = vld [vmem:[%s3 + $0x58] sm:$0xff]
      %v331 = vld [vmem:[%s3 + $0x60] sm:$0xff]
      %v332 = vld [vmem:[%s3 + $0x68] sm:$0xff]
      %v333 = vld [vmem:[%s3 + $0x70] sm:$0xf]
      %v334 = vld [vmem:[%s3 + $0x78] sm:$0xf]
      %v335 = vld [vmem:[%s4] sm:$0x3]
      %v337 = vlaneseq
      %v338 = vshrl.u32 %v337, 7
      %v339 = vsub.s32 0, %v338
      %v340 = vrot.slane %v335, %v339
      %v341 = vlaneseq
      %v342 = vshrl.u32 %v341, 7
      %v343 = vsub.s32 1, %v342
      %v344 = vrot.slane %v335, %v343
      %vm347 = vcmask 490496
      %v349 = vsel %vm347, %v318, 0
      %vm351 = vcmask 1043456
      %v353 = vsel %vm351, %v333, 0
      %v356 = vsel %vm351, %v334, 0
      %358 = vmatprep.subr.mxu0 %v320
      %359 = vmatpush1.msra.mxu0 %v319
      %360 = vmatprep.subr.mxu0 %v322
      %361 = vmatpush1.msra.mxu0 %v321
      %362 = vmatprep.subr.mxu0 %v324
      %363 = vmatpush1.msra.mxu0 %v323
      %364 = vmatprep.subr.mxu0 %v326
      %365 = vmatpush1.msra.mxu0 %v325
      %366 = vmatprep.subr.mxu0 %v328
      %367 = vmatpush1.msra.mxu0 %v327
      %368 = vmatprep.subr.mxu0 %v330
      %369 = vmatpush1.msra.mxu0 %v329
      %370 = vmatprep.subr.mxu0 %v332
      %371 = vmatpush1.msra.mxu0 %v331
      %372 = vmatprep.subr.mxu0 %v356
      %373 = vmatpush1.msra.mxu0 %v353
      %374 = vmatprep.subr.mxu0 0.0
      %375 = vmatpush1.msra.mxu0 0.0
      %376 = vmatprep.subr.mxu0 0.0
      %377 = vmatpush1.msra.mxu0 0.0
      %378 = vmatprep.subr.mxu0 0.0
      %379 = vmatpush1.msra.mxu0 0.0
      %380 = vmatprep.subr.mxu0 0.0
      %381 = vmatpush1.msra.mxu0 0.0
      %382 = vmatprep.subr.mxu0 0.0
      %383 = vmatpush1.msra.mxu0 0.0
      %384 = vmatprep.subr.mxu0 0.0
      %385 = vmatpush1.msra.mxu0 0.0
      %386 = vmatprep.subr.mxu0 0.0
      %387 = vmatpush1.msra.mxu0 0.0
      %388 = vmatprep.subr.mxu0 0.0
      %389 = vmatpush1.msra.mxu0 0.0
      %390 = vmatprep.subr.mxu0 0.0
      %391 = vmatpush1.msra.mxu0 0.0
      %392 = vmatprep.subr.mxu0 0.0
      %393 = vmatpush1.msra.mxu0 0.0
      %394 = vmatprep.subr.mxu0 0.0
      %395 = vmatpush1.msra.mxu0 0.0
      %396 = vmatprep.subr.mxu0 0.0
      %397 = vmatpush1.msra.mxu0 0.0
      %398 = vmatprep.subr.mxu0 0.0
      %399 = vmatpush1.msra.mxu0 0.0
      %400 = vmatprep.subr.mxu0 0.0
      %401 = vmatpush1.msra.mxu0 0.0
      %402 = vmatprep.subr.mxu0 0.0
      %403 = vmatpush1.msra.mxu0 0.0
      %404 = vmatprep.subr.mxu0 0.0
      %405 = vmatpush1.msra.mxu0 0.0
      %406 = vmatprep.subr.mxu0 0.0
      %407 = vmatpush1.msra.mxu0 0.0
      %408 = vmatprep.subr.mxu0 0.0
      %409 = vmatpush1.msra.mxu0 0.0
      %410 = vmatprep.subr.mxu0 0.0
      %411 = vmatpush1.msra.mxu0 0.0
      %412 = vmatprep.subr.mxu0 0.0
      %413 = vmatpush1.msra.mxu0 0.0
      %414 = vmatprep.subr.mxu0 0.0
      %415 = vmatpush1.msra.mxu0 0.0
      %416 = vmatprep.subr.mxu0 0.0
      %417 = vmatpush1.msra.mxu0 0.0
      %418 = vmatprep.subr.mxu0 0.0
      %419 = vmatpush1.msra.mxu0 0.0
      %420 = vmatprep.subr.mxu0 0.0
      %421 = vmatpush1.msra.mxu0 0.0
      %422 = vmatprep.mubr.f32.mxu0 0.0
      %423 = vmatmul.mubr.f32.gmra.mrb[0].mxu0 %v349
      %v424 = vpop.f32.mrb[0].mxu0
      %v425 = vadd.f32 %v340, %v424
      %v426 = vpop.f32.mrb[0].mxu0
      %v427 = vadd.f32 %v344, %v426
      %428 = vdwg.mxu0
      %v429 = vpack.c.bf16 %v425, %v425
      %431 = vrot.lane.b32.xlu0 %v429, 68
      %v432 = vpop.permute.xlu0 %431
      %v434 = vsel %vm347, %v429, 0
      %v437 = vsel %vm347, %v432, 0
      %439 = vmatprep.subr.bf16.mxu0 0
      %440 = vmatpush1.bf16.xpose.msra.mxu0 %v437
      %441 = vmatprep.subr.bf16.mxu0 0
      %442 = vmatpush1.bf16.xpose.msra.mxu0 0
      %443 = vmatprep.subr.bf16.mxu0 0
      %444 = vmatpush1.bf16.xpose.msra.mxu0 0
      %445 = vmatprep.subr.bf16.mxu0 0
      %446 = vmatpush1.bf16.xpose.msra.mxu0 0
      %447 = vmatprep.subr.bf16.mxu0 0
      %448 = vmatpush1.bf16.xpose.msra.mxu0 0
      %449 = vmatprep.subr.bf16.mxu0 0
      %450 = vmatpush1.bf16.xpose.msra.mxu0 0
      %451 = vmatprep.subr.bf16.mxu0 0
      %452 = vmatpush1.bf16.xpose.msra.mxu0 0
      %453 = vmatprep.subr.bf16.mxu0 0
      %454 = vmatpush1.bf16.xpose.msra.mxu0 0
      %455 = vmatprep.subr.bf16.mxu0 0
      %456 = vmatpush1.bf16.xpose.msra.mxu0 0
      %457 = vmatprep.subr.bf16.mxu0 0
      %458 = vmatpush1.bf16.xpose.msra.mxu0 0
      %459 = vmatprep.subr.bf16.mxu0 0
      %460 = vmatpush1.bf16.xpose.msra.mxu0 0
      %461 = vmatprep.subr.bf16.mxu0 0
      %462 = vmatpush1.bf16.xpose.msra.mxu0 0
      %463 = vmatprep.subr.bf16.mxu0 0
      %464 = vmatpush1.bf16.xpose.msra.mxu0 0
      %465 = vmatprep.subr.bf16.mxu0 0
      %466 = vmatpush1.bf16.xpose.msra.mxu0 0
      %467 = vmatprep.subr.bf16.mxu0 0
      %468 = vmatpush1.bf16.xpose.msra.mxu0 0
      %469 = vmatprep.subr.bf16.mxu0 0
      %470 = vmatpush1.bf16.xpose.msra.mxu0 0
      %471 = vmatprep.mubr.bf16.mxu0 0
      %472 = vmatmul.mubr.bf16.gmra.mrb[0].mxu0 %v434
      %v473 = vpop.f32.mrb[0].mxu0
      %v474 = vadd.f32 0.0, %v473
      %v475 = vpop.f32.mrb[0].mxu0
      %v476 = vpop.f32.mrb[0].mxu0
      %v477 = vpop.f32.mrb[0].mxu0
      %478 = vdwg.mxu0
      %vm479 = vcmask 64512
      %v480 = vsel %vm479, %v474, -inf
      %481 = vmax.xlane.f32.xlu0 %v480
      %v482 = vpop.xlane.xlu0 %481
      %v483 = vsub.f32 %v474, %v482
      %v484 = vmul.f32 %v483, 1.442695
      %v485 = vpow.pop %v484
      %v486 = vsel %vm479, %v485, 0.0
      %487 = vadd.xlane.f32.xlu0 %v486
      %v488 = vpop.xlane.xlu0 %487
      %v489 = vpack.c.bf16 %v485, %v485
      %v490 = vpack.c.bf16 %v427, %v427
      %492 = vrot.lane.b32.xlu0 %v429, 8
      %v493 = vpop.permute.xlu0 %492
      %494 = vrot.lane.b32.xlu0 %v490, 8
      %v495 = vpop.permute.xlu0 %494
      %vm496 = vcmask 64512
      %v497 = vsel %vm496, %v493, %v495
      %v499 = vsel %vm479, %v489, 0
      %v502 = vsel %vm351, %v497, 0
      %504 = vmatprep.subr.bf16.mxu0 0
      %505 = vmatpush1.bf16.msra.mxu0 %v502
      %506 = vmatprep.subr.bf16.mxu0 0
      %507 = vmatpush1.bf16.msra.mxu0 0
      %508 = vmatprep.subr.bf16.mxu0 0
      %509 = vmatpush1.bf16.msra.mxu0 0
      %510 = vmatprep.subr.bf16.mxu0 0
      %511 = vmatpush1.bf16.msra.mxu0 0
      %512 = vmatprep.subr.bf16.mxu0 0
      %513 = vmatpush1.bf16.msra.mxu0 0
      %514 = vmatprep.subr.bf16.mxu0 0
      %515 = vmatpush1.bf16.msra.mxu0 0
      %516 = vmatprep.subr.bf16.mxu0 0
      %517 = vmatpush1.bf16.msra.mxu0 0
      %518 = vmatprep.subr.bf16.mxu0 0
      %519 = vmatpush1.bf16.msra.mxu0 0
      %520 = vmatprep.subr.bf16.mxu0 0
      %521 = vmatpush1.bf16.msra.mxu0 0
      %522 = vmatprep.subr.bf16.mxu0 0
      %523 = vmatpush1.bf16.msra.mxu0 0
      %524 = vmatprep.subr.bf16.mxu0 0
      %525 = vmatpush1.bf16.msra.mxu0 0
      %526 = vmatprep.subr.bf16.mxu0 0
      %527 = vmatpush1.bf16.msra.mxu0 0
      %528 = vmatprep.subr.bf16.mxu0 0
      %529 = vmatpush1.bf16.msra.mxu0 0
      %530 = vmatprep.subr.bf16.mxu0 0
      %531 = vmatpush1.bf16.msra.mxu0 0
      %532 = vmatprep.subr.bf16.mxu0 0
      %533 = vmatpush1.bf16.msra.mxu0 0
      %534 = vmatprep.subr.bf16.mxu0 0
      %535 = vmatpush1.bf16.msra.mxu0 0
      %536 = vmatprep.mubr.bf16.mxu0 0
      %537 = vmatmul.mubr.bf16.gmra.mrb[0].mxu0 %v499
      %v538 = vpop.f32.mrb[0].mxu0
      %v539 = vadd.f32 0.0, %v538
      %v540 = vpop.f32.mrb[0].mxu0
      %v541 = vpop.f32.mrb[0].mxu0
      %v542 = vpop.f32.mrb[0].mxu0
      %543 = vdwg.mxu0
      %v544 = vrcp.pop %v488
      %v545 = vmul.f32 %v539, %v544
      %v546 = vadd.f32 %v545, %v318
      %v547 = vmax.f32 %v546, 0.0
      %v548 = vsel %vm347, %v547, -inf
      %v549 = vrot.slane %v548, 4
      %v550 = vmax.f32 %v548, %v549
      %v551 = vrot.slane %v550, 2
      %v552 = vmax.f32 %v550, %v551
      %v553 = vrot.slane %v552, 1
      %v554 = vmax.f32 %v552, %v553
      %v555 = vld [vmem:[%s5] sm:$0xff]
      %v556 = vld [vmem:[%s5 + $0x8] sm:$0xff]
      %v557 = vld [vmem:[%s5 + $0x10] sm:$0xff]
      %v558 = vld [vmem:[%s5 + $0x18] sm:$0xff]
      %v559 = vld [vmem:[%s5 + $0x20] sm:$0xff]
      %v560 = vld [vmem:[%s5 + $0x28] sm:$0xff]
      %v561 = vld [vmem:[%s5 + $0x30] sm:$0xff]
      %v562 = vld [vmem:[%s5 + $0x38] sm:$0xf]
      %v563 = vld [vmem:[%s6] sm:$0xff]
      %v564 = vld [vmem:[%s6 + $0x8] sm:$0xff]
      %v565 = vld [vmem:[%s6 + $0x10] sm:$0xff]
      %v566 = vld [vmem:[%s6 + $0x18] sm:$0xff]
      %v567 = vld [vmem:[%s6 + $0x20] sm:$0xff]
      %v568 = vld [vmem:[%s6 + $0x28] sm:$0xff]
      %v569 = vld [vmem:[%s6 + $0x30] sm:$0xff]
      %v570 = vld [vmem:[%s6 + $0x38] sm:$0xf]
      %v572 = vsel %vm347, %v554, 0
      %v575 = vsel %vm351, %v570, 0
      %577 = vmatprep.subr.mxu0 0.0
      %578 = vmatpush1.msra.mxu0 %v563
      %579 = vmatprep.subr.mxu0 0.0
      %580 = vmatpush1.msra.mxu0 %v564
      %581 = vmatprep.subr.mxu0 0.0
      %582 = vmatpush1.msra.mxu0 %v565
      %583 = vmatprep.subr.mxu0 0.0
      %584 = vmatpush1.msra.mxu0 %v566
      %585 = vmatprep.subr.mxu0 0.0
      %586 = vmatpush1.msra.mxu0 %v567
      %587 = vmatprep.subr.mxu0 0.0
      %588 = vmatpush1.msra.mxu0 %v568
      %589 = vmatprep.subr.mxu0 0.0
      %590 = vmatpush1.msra.mxu0 %v569
      %591 = vmatprep.subr.mxu0 0.0
      %592 = vmatpush1.msra.mxu0 %v575
      %593 = vmatprep.subr.mxu0 0.0
      %594 = vmatpush1.msra.mxu0 0.0
      %595 = vmatprep.subr.mxu0 0.0
      %596 = vmatpush1.msra.mxu0 0.0
      %597 = vmatprep.subr.mxu0 0.0
      %598 = vmatpush1.msra.mxu0 0.0
      %599 = vmatprep.subr.mxu0 0.0
      %600 = vmatpush1.msra.mxu0 0.0
      %601 = vmatprep.subr.mxu0 0.0
      %602 = vmatpush1.msra.mxu0 0.0
      %603 = vmatprep.subr.mxu0 0.0
      %604 = vmatpush1.msra.mxu0 0.0
      %605 = vmatprep.subr.mxu0 0.0
      %606 = vmatpush1.msra.mxu0 0.0
      %607 = vmatprep.subr.mxu0 0.0
      %608 = vmatpush1.msra.mxu0 0.0
      %609 = vmatprep.subr.mxu0 0.0
      %610 = vmatpush1.msra.mxu0 0.0
      %611 = vmatprep.subr.mxu0 0.0
      %612 = vmatpush1.msra.mxu0 0.0
      %613 = vmatprep.subr.mxu0 0.0
      %614 = vmatpush1.msra.mxu0 0.0
      %615 = vmatprep.subr.mxu0 0.0
      %616 = vmatpush1.msra.mxu0 0.0
      %617 = vmatprep.subr.mxu0 0.0
      %618 = vmatpush1.msra.mxu0 0.0
      %619 = vmatprep.subr.mxu0 0.0
      %620 = vmatpush1.msra.mxu0 0.0
      %621 = vmatprep.subr.mxu0 0.0
      %622 = vmatpush1.msra.mxu0 0.0
      %623 = vmatprep.subr.mxu0 0.0
      %624 = vmatpush1.msra.mxu0 0.0
      %625 = vmatprep.subr.mxu0 0.0
      %626 = vmatpush1.msra.mxu0 0.0
      %627 = vmatprep.subr.mxu0 0.0
      %628 = vmatpush1.msra.mxu0 0.0
      %629 = vmatprep.subr.mxu0 0.0
      %630 = vmatpush1.msra.mxu0 0.0
      %631 = vmatprep.subr.mxu0 0.0
      %632 = vmatpush1.msra.mxu0 0.0
      %633 = vmatprep.subr.mxu0 0.0
      %634 = vmatpush1.msra.mxu0 0.0
      %635 = vmatprep.subr.mxu0 0.0
      %636 = vmatpush1.msra.mxu0 0.0
      %637 = vmatprep.subr.mxu0 0.0
      %638 = vmatpush1.msra.mxu0 0.0
      %639 = vmatprep.subr.mxu0 0.0
      %640 = vmatpush1.msra.mxu0 0.0
      %641 = vmatprep.mubr.f32.mxu0 0.0
      %642 = vmatmul.mubr.f32.gmra.mrb[0].mxu0 %v572
      %v643 = vpop.f32.mrb[0].mxu0
      %v644 = vadd.f32 0.0, %v643
      %v645 = vpop.f32.mrb[0].mxu0
      %646 = vdwg.mxu0
      %v647 = vlaneseq
      %v648 = vshrl.u32 %v647, 7
      %v649 = vsub.s32 0, %v648
      %v650 = vrot.slane %v644, %v649
      %v652 = vsel %vm347, %v547, 0
      %v655 = vsel %vm351, %v562, 0
      %657 = vmatprep.subr.mxu0 0.0
      %658 = vmatpush1.msra.mxu0 %v555
      %659 = vmatprep.subr.mxu0 0.0
      %660 = vmatpush1.msra.mxu0 %v556
      %661 = vmatprep.subr.mxu0 0.0
      %662 = vmatpush1.msra.mxu0 %v557
      %663 = vmatprep.subr.mxu0 0.0
      %664 = vmatpush1.msra.mxu0 %v558
      %665 = vmatprep.subr.mxu0 0.0
      %666 = vmatpush1.msra.mxu0 %v559
      %667 = vmatprep.subr.mxu0 0.0
      %668 = vmatpush1.msra.mxu0 %v560
      %669 = vmatprep.subr.mxu0 0.0
      %670 = vmatpush1.msra.mxu0 %v561
      %671 = vmatprep.subr.mxu0 0.0
      %672 = vmatpush1.msra.mxu0 %v655
      %673 = vmatprep.subr.mxu0 0.0
      %674 = vmatpush1.msra.mxu0 0.0
      %675 = vmatprep.subr.mxu0 0.0
      %676 = vmatpush1.msra.mxu0 0.0
      %677 = vmatprep.subr.mxu0 0.0
      %678 = vmatpush1.msra.mxu0 0.0
      %679 = vmatprep.subr.mxu0 0.0
      %680 = vmatpush1.msra.mxu0 0.0
      %681 = vmatprep.subr.mxu0 0.0
      %682 = vmatpush1.msra.mxu0 0.0
      %683 = vmatprep.subr.mxu0 0.0
      %684 = vmatpush1.msra.mxu0 0.0
      %685 = vmatprep.subr.mxu0 0.0
      %686 = vmatpush1.msra.mxu0 0.0
      %687 = vmatprep.subr.mxu0 0.0
      %688 = vmatpush1.msra.mxu0 0.0
      %689 = vmatprep.subr.mxu0 0.0
      %690 = vmatpush1.msra.mxu0 0.0
      %691 = vmatprep.subr.mxu0 0.0
      %692 = vmatpush1.msra.mxu0 0.0
      %693 = vmatprep.subr.mxu0 0.0
      %694 = vmatpush1.msra.mxu0 0.0
      %695 = vmatprep.subr.mxu0 0.0
      %696 = vmatpush1.msra.mxu0 0.0
      %697 = vmatprep.subr.mxu0 0.0
      %698 = vmatpush1.msra.mxu0 0.0
      %699 = vmatprep.subr.mxu0 0.0
      %700 = vmatpush1.msra.mxu0 0.0
      %701 = vmatprep.subr.mxu0 0.0
      %702 = vmatpush1.msra.mxu0 0.0
      %703 = vmatprep.subr.mxu0 0.0
      %704 = vmatpush1.msra.mxu0 0.0
      %705 = vmatprep.subr.mxu0 0.0
      %706 = vmatpush1.msra.mxu0 0.0
      %707 = vmatprep.subr.mxu0 0.0
      %708 = vmatpush1.msra.mxu0 0.0
      %709 = vmatprep.subr.mxu0 0.0
      %710 = vmatpush1.msra.mxu0 0.0
      %711 = vmatprep.subr.mxu0 0.0
      %712 = vmatpush1.msra.mxu0 0.0
      %713 = vmatprep.subr.mxu0 0.0
      %714 = vmatpush1.msra.mxu0 0.0
      %715 = vmatprep.subr.mxu0 0.0
      %716 = vmatpush1.msra.mxu0 0.0
      %717 = vmatprep.subr.mxu0 0.0
      %718 = vmatpush1.msra.mxu0 0.0
      %719 = vmatprep.subr.mxu0 0.0
      %720 = vmatpush1.msra.mxu0 0.0
      %721 = vmatprep.mubr.f32.mxu0 0.0
      %722 = vmatmul.mubr.f32.gmra.mrb[0].mxu0 %v652
      %v723 = vpop.f32.mrb[0].mxu0
      %v724 = vadd.f32 %v650, %v723
      %v725 = vpop.f32.mrb[0].mxu0
      %726 = vdwg.mxu0
      %v727 = vld [vmem:[%s7] sm:$0x1]
      %v729 = vlaneseq
      %v730 = vshrl.u32 %v729, 7
      %v731 = vsub.s32 0, %v730
      %v732 = vrot.slane %v727, %v731
      %v734 = vadd.f32 %v724, %v732
      %vm735 = vcmask 15360
      %736 = vst.msk [vmem:[%s300] sm:$0xff] %vm735, %v734
      %p737 = scmp.lt.s32.totalorder %s19, 1
      %s738 = scalar_select %p737, %s19, 1
      %s739 = smul.addr %s738, 8
      %s740 = scalar_lea.vmem %s8, %s739
      // Predicated region
      $region53: #{discriminator_forward.3} parent=51 // pred_check
        %p741 = pneg %p210
      $region54: #{discriminator_forward.3} parent=51 // pred_check_branch
        %743 = sbr.rel (%p741) target = $region56
      $region55: #{discriminator_forward.3} parent=51 // pred_region
        _
      $region56: #{discriminator_forward.3} parent=51 // pred_fallthru
        _
    $region52: #{discriminator_forward.3} parent=5 // pred_fallthru
      _
    %p744 = scmp.le.s32.totalorder 2, %s14
    // Predicated region
    $region57: #{discriminator_forward.3} parent=5 // pred_check
      %p745 = pneg %p744
    $region58: #{discriminator_forward.3} parent=5 // pred_check_branch
      %747 = sbr.rel (%p745) target = $region60
    $region59: #{discriminator_forward.3} parent=5 // pred_region
      %s748 = ssub.s32 %s14, 2
      // Predicated region
      $region61: #{discriminator_forward.3} parent=59 // pred_check
        %p749 = pneg %p216
      $region62: #{discriminator_forward.3} parent=59 // pred_check_branch
        %751 = sbr.rel (%p749) target = $region64
      $region63: #{discriminator_forward.3} parent=59 // pred_region
        %p752 = scmp.lt.s32.totalorder %s20, 1
        %s753 = scalar_select %p752, %s20, 1
        %s754 = smul.addr %s753, 8
        %s755 = scalar_lea.vmem %s8, %s754
      $region64: #{discriminator_forward.3} parent=59 // pred_fallthru
        _
    $region60: #{discriminator_forward.3} parent=5 // pred_fallthru
      _
  $region6: #{discriminator_forward.3} parent=0 // loop_footer
    %s18 = sadd.s32 1, %s14
  $region7: #{discriminator_forward.3} parent=0 // loop_footer_branch
    %13 = sbr.rel target = $region3
  $region8: #{discriminator_forward.3} parent=0 // loop_exit
    _

</llo_original>
